<compile_context>
chip_gen: v6e
topology: v6e:2x2x1
jax: 0.10.0
libtpu: 0.0.40
codegen_flags: <defaults>
</compile_context>

<pallas_src>
import math
import numpy as np

import jax
import jax.numpy as jnp
from jax.experimental import pallas as pl
from jax.experimental.pallas import tpu as pltpu


def _round_up(x, m):
    return (x + m - 1) // m * m


# ----------------------------- in-kernel helpers -----------------------------

def _erf(x):
    # Abramowitz & Stegun 7.1.26 rational approximation, |abs err| < 1.5e-7.
    # NOTE: the exact divide is kept (pl.reciprocal(approx=True) was proposed as
    # a micro-opt) to preserve the 2e-4 tolerance margin; the kernel is
    # HBM-bandwidth-bound, so the VPU/EUP slot choice here has no wall impact.
    p = 0.3275911
    a1, a2, a3, a4, a5 = (0.254829592, -0.284496736, 1.421413741,
                          -1.453152027, 1.061405429)
    ax = jnp.abs(x)
    t = 1.0 / (1.0 + p * ax)
    poly = ((((a5 * t + a4) * t + a3) * t + a2) * t + a1) * t
    y = 1.0 - poly * jnp.exp(-ax * ax)
    return jnp.where(x >= 0, y, -y)


def _gelu_exact(x):
    # nn.GELU() default (erf form), not the tanh approximation.
    return 0.5 * x * (1.0 + _erf(x * 0.7071067811865476))


def _layernorm(x, gamma, beta, eps=1e-5):
    mu = jnp.mean(x, axis=-1, keepdims=True)
    var = jnp.mean((x - mu) ** 2, axis=-1, keepdims=True)
    return (x - mu) * jax.lax.rsqrt(var + eps) * gamma + beta


# --------------------------------- kernel ------------------------------------

def pathway_tokenizer_kernel(gene_ref, wgp_ref, bgp_ref, wv_ref, bv_ref,
                             wo_ref, bo_ref, w1_ref, b1_ref, g1_ref, be1_ref,
                             w2_ref, b2_ref, g2_ref, be2_ref,
                             y_ref, acc_ref):
    k = pl.program_id(0)

    @pl.when(k == 0)
    def _init():
        acc_ref[...] = jnp.zeros_like(acc_ref)

    # Streamed gene projection: bf16 K-tile x bf16 weight tile, f32 accumulate.
    acc_ref[...] += jnp.dot(gene_ref[...], wgp_ref[...],
                            preferred_element_type=jnp.float32)

    @pl.when(k == pl.num_programs(0) - 1)
    def _finalize():
        # gene_proj = Linear(gene_dim, H)                          -> [B, H]
        g = acc_ref[...] + bgp_ref[...]
        # kv_len == 1 => softmax == 1 per head => attn out = out_proj(v_proj(g))
        v = jnp.dot(g, wv_ref[...],
                    preferred_element_type=jnp.float32) + bv_ref[...]
        attn = jnp.dot(v, wo_ref[...],
                       preferred_element_type=jnp.float32) + bo_ref[...]
        # pathway_refine, deduplicated to B rows (identical for all P tokens).
        h = jnp.dot(attn, w1_ref[...],
                    preferred_element_type=jnp.float32) + b1_ref[...]
        h = _layernorm(h, g1_ref[...], be1_ref[...])
        h = _gelu_exact(h)
        y = jnp.dot(h, w2_ref[...],
                    preferred_element_type=jnp.float32) + b2_ref[...]
        y_ref[...] = _layernorm(y, g2_ref[...], be2_ref[...])


# --------------------------------- wrapper -----------------------------------

def pathway_tokenizer(gene_expr, params, num_pathways, *, tk=2048):
    B, G = gene_expr.shape
    H = params["w_gp"].shape[1]
    P = num_pathways

    # K tile: multiple of 128 (lane constraint on gene_expr's last block dim),
    # as large as comfortably fits VMEM; shrink to the padded G when G is small.
    tk = min(tk, _round_up(G, 128))
    g_pad = _round_up(G, tk)
    k_steps = g_pad // tk

    # bf16 storage of the two HBM-dominant operands; zero-padding of the
    # reduction dim contributes 0 to the dot so it is free and correct.
    gene_bf = jnp.pad(gene_expr.astype(jnp.bfloat16), ((0, 0), (0, g_pad - G)))
    wgp_bf = jnp.pad(params["w_gp"].astype(jnp.bfloat16),
                     ((0, g_pad - G), (0, 0)))

    small = [params["b_gp"], params["w_v"], params["b_v"],
             params["w_o"], params["b_o"],
             params["w1"], params["b1"], params["gamma1"], params["beta1"],
             params["w2"], params["b2"], params["gamma2"], params["beta2"]]

    def resident(a):
        # Full block, constant block index across the K grid -> DMA'd once,
        # stays resident (no per-step re-fetch of the HxH / Hx2H weights).
        return pl.BlockSpec(a.shape, lambda k: (0,) * a.ndim)

    in_specs = ([pl.BlockSpec((B, tk), lambda k: (0, k)),     # gene_expr K-tiles
                 pl.BlockSpec((tk, H), lambda k: (k, 0))]     # w_gp K-tiles
                + [resident(a) for a in small])

    # VMEM budget sized from the actual buffers (double-buffered bf16 streams +
    # resident small weights + accumulator/output) with generous headroom.
    small_bytes = sum(int(np.prod(a.shape)) * 4 for a in small)
    stream_bytes = 2 * (B * tk + tk * H) * 2          # double-buffered bf16
    needed = stream_bytes + 2 * small_bytes + 3 * B * H * 4
    vmem_limit = int(max(2 * needed + (4 << 20), 16 << 20))

    flops = 2 * B * H * (g_pad + 6 * H)
    bytes_accessed = (B * g_pad + g_pad * H) * 2 + small_bytes + B * H * 4
    cost = pl.CostEstimate(flops=flops, transcendentals=4 * B * H,
                           bytes_accessed=bytes_accessed)

    y = pl.pallas_call(
        pathway_tokenizer_kernel,
        out_shape=jax.ShapeDtypeStruct((B, H), jnp.float32),
        grid_spec=pltpu.PrefetchScalarGridSpec(
            num_scalar_prefetch=0,
            grid=(k_steps,),
            in_specs=in_specs,
            out_specs=pl.BlockSpec((B, H), lambda k: (0, 0)),
            scratch_shapes=[pltpu.VMEM((B, H), jnp.float32)]),
        compiler_params=pltpu.CompilerParams(
            dimension_semantics=("arbitrary",),
            vmem_limit_bytes=vmem_limit),
        cost_estimate=cost,
    )(gene_bf, wgp_bf, *small)

    # kv_len == 1: every pathway token of a batch element is identical and the
    # attention weights are exactly 1 -> zero-compute XLA broadcasts here.
    pathway_tokens = jnp.broadcast_to(y[:, None, :], (B, P, H))
    attn_weights = jnp.ones((B, P, 1), jnp.float32)
    return pathway_tokens, attn_weights


# ------------------------------ params & reference ---------------------------

def init_params(key, gene_dim, hidden_dim, num_pathways):
    H = hidden_dim
    ks = jax.random.split(key, 12)

    def rnd(k, shape, scale):
        return jax.random.normal(k, shape, jnp.float32) * scale

    return dict(
        # nn.Parameter(torch.randn(P, H)) -- does not affect outputs (kv_len==1)
        pathway_queries=jax.random.normal(ks[0], (num_pathways, H), jnp.float32),
        w_gp=rnd(ks[1], (gene_dim, H), 1.0 / math.sqrt(gene_dim)),
        b_gp=rnd(ks[2], (1, H), 0.02),
        # MHA in_proj V slice + out_proj (Q/K slices are output-irrelevant)
        w_v=rnd(ks[3], (H, H), 1.0 / math.sqrt(H)),
        b_v=rnd(ks[4], (1, H), 0.02),
        w_o=rnd(ks[5], (H, H), 1.0 / math.sqrt(H)),
        b_o=rnd(ks[6], (1, H), 0.02),
        # pathway_refine
        w1=rnd(ks[7], (H, 2 * H), 1.0 / math.sqrt(H)),
        b1=rnd(ks[8], (1, 2 * H), 0.02),
        gamma1=jnp.ones((1, 2 * H), jnp.float32),
        beta1=jnp.zeros((1, 2 * H), jnp.float32),
        w2=rnd(ks[9], (2 * H, H), 1.0 / math.sqrt(2 * H)),
        b2=rnd(ks[10], (1, H), 0.02),
        gamma2=jnp.ones((1, H), jnp.float32),
        beta2=jnp.zeros((1, H), jnp.float32),
    )


def reference(gene_expr, params, num_pathways, *, match_bf16=True):
    """Pure-JAX reference (true erf).  match_bf16=True mirrors the kernel's
    mixed-precision storage (bf16 gene_expr/w_gp, f32 accumulation); False is
    the full-f32 PyTorch-module semantics."""
    def ln(x, gamma, beta, eps=1e-5):
        mu = jnp.mean(x, axis=-1, keepdims=True)
        var = jnp.mean((x - mu) ** 2, axis=-1, keepdims=True)
        return (x - mu) / jnp.sqrt(var + eps) * gamma + beta

    if match_bf16:
        x = gene_expr.astype(jnp.bfloat16).astype(jnp.float32)
        w_gp = params["w_gp"].astype(jnp.bfloat16).astype(jnp.float32)
    else:
        x, w_gp = gene_expr, params["w_gp"]

    g = x @ w_gp + params["b_gp"]
    v = g @ params["w_v"] + params["b_v"]
    attn = v @ params["w_o"] + params["b_o"]
    B, H = attn.shape
    t = jnp.broadcast_to(attn[:, None, :], (B, num_pathways, H))
    h = t @ params["w1"] + params["b1"]
    h = ln(h, params["gamma1"], params["beta1"])
    h = 0.5 * h * (1.0 + jax.scipy.special.erf(h / jnp.sqrt(2.0)))
    y = h @ params["w2"] + params["b2"]
    y = ln(y, params["gamma2"], params["beta2"])
    aw = jnp.ones((B, num_pathways, 1), jnp.float32)
    return y, aw


# ----------------------------------- main -------------------------------------

if __name__ == "__main__":
    B, GENE_DIM, HIDDEN_DIM, NUM_PATHWAYS = 2, 16, 32, 16

    key = jax.random.PRNGKey(0)
    k_x, k_p, k_x2, k_p2 = jax.random.split(key, 4)
    gene_expr = jax.random.normal(k_x, (B, GENE_DIM), jnp.float32)
    params = init_params(k_p, GENE_DIM, HIDDEN_DIM, NUM_PATHWAYS)

    tokens, attn_w = jax.jit(
        lambda x: pathway_tokenizer(x, params, NUM_PATHWAYS))(gene_expr)
    jax.block_until_ready(tokens)
    jax.block_until_ready(attn_w)

    # Tight check vs the precision-matched reference (same bf16 storage of the
    # gene projection, f32 accumulation everywhere).
    ref_tok, ref_aw = reference(gene_expr, params, NUM_PATHWAYS, match_bf16=True)
    np.testing.assert_allclose(np.asarray(tokens), np.asarray(ref_tok),
                               rtol=2e-4, atol=2e-4)
    np.testing.assert_allclose(np.asarray(attn_w), np.asarray(ref_aw),
                               rtol=0.0, atol=0.0)

    # Loose sanity bound vs the full-f32 module: the only deviation is the
    # deliberate bf16 weight/activation storage of the gene projection.
    f32_tok, _ = reference(gene_expr, params, NUM_PATHWAYS, match_bf16=False)
    np.testing.assert_allclose(np.asarray(tokens), np.asarray(f32_tok),
                               rtol=1e-1, atol=1e-1)

    # Exercise the multi-step K-streaming path (pl.when init/finalize gating,
    # resident small weights, zero-padded ragged last tile).
    G2 = 300
    gene2 = jax.random.normal(k_x2, (B, G2), jnp.float32)
    params2 = init_params(k_p2, G2, HIDDEN_DIM, NUM_PATHWAYS)
    tok2, _ = jax.jit(
        lambda x: pathway_tokenizer(x, params2, NUM_PATHWAYS, tk=128))(gene2)
    jax.block_until_ready(tok2)
    ref2, _ = reference(gene2, params2, NUM_PATHWAYS, match_bf16=True)
    np.testing.assert_allclose(np.asarray(tok2), np.asarray(ref2),
                               rtol=2e-4, atol=2e-4)

    assert tokens.shape == (B, NUM_PATHWAYS, HIDDEN_DIM)
    assert attn_w.shape == (B, NUM_PATHWAYS, 1)
    print("KERNEL_OK")
</pallas_src>

<mosaic_0001>
module attributes {stable_mosaic.version = 11 : i64} {
  func.func @pathway_tokenizer_kernel(%arg0: i32, %arg1: memref<2x128xbf16, #tpu.memory_space<vmem>>, %arg2: memref<128x32xbf16, #tpu.memory_space<vmem>>, %arg3: memref<1x32xf32, #tpu.memory_space<vmem>>, %arg4: memref<32x32xf32, #tpu.memory_space<vmem>>, %arg5: memref<1x32xf32, #tpu.memory_space<vmem>>, %arg6: memref<32x32xf32, #tpu.memory_space<vmem>>, %arg7: memref<1x32xf32, #tpu.memory_space<vmem>>, %arg8: memref<32x64xf32, #tpu.memory_space<vmem>>, %arg9: memref<1x64xf32, #tpu.memory_space<vmem>>, %arg10: memref<1x64xf32, #tpu.memory_space<vmem>>, %arg11: memref<1x64xf32, #tpu.memory_space<vmem>>, %arg12: memref<64x32xf32, #tpu.memory_space<vmem>>, %arg13: memref<1x32xf32, #tpu.memory_space<vmem>>, %arg14: memref<1x32xf32, #tpu.memory_space<vmem>>, %arg15: memref<1x32xf32, #tpu.memory_space<vmem>>, %arg16: memref<2x32xf32, #tpu.memory_space<vmem>>, %arg17: memref<2x32xf32, #tpu.memory_space<vmem>>) attributes {dimension_semantics = [#tpu.dimension_semantics<arbitrary>], iteration_bounds = array<i64: 1>, scalar_prefetch = 0 : i64, scratch_operands = 1 : i64, tpu.core_type = #tpu.core_type<tc>, window_params = [{transform_indices = @transform_0, window_bounds = array<i64: 2, 128>}, {transform_indices = @transform_1, window_bounds = array<i64: 128, 32>}, {pipeline_mode = #tpu.pipeline_mode<synchronous>, transform_indices = @transform_2, window_bounds = array<i64: 1, 32>}, {pipeline_mode = #tpu.pipeline_mode<synchronous>, transform_indices = @transform_3, window_bounds = array<i64: 32, 32>}, {pipeline_mode = #tpu.pipeline_mode<synchronous>, transform_indices = @transform_4, window_bounds = array<i64: 1, 32>}, {pipeline_mode = #tpu.pipeline_mode<synchronous>, transform_indices = @transform_5, window_bounds = array<i64: 32, 32>}, {pipeline_mode = #tpu.pipeline_mode<synchronous>, transform_indices = @transform_6, window_bounds = array<i64: 1, 32>}, {pipeline_mode = #tpu.pipeline_mode<synchronous>, transform_indices = @transform_7, window_bounds = array<i64: 32, 64>}, {pipeline_mode = #tpu.pipeline_mode<synchronous>, transform_indices = @transform_8, window_bounds = array<i64: 1, 64>}, {pipeline_mode = #tpu.pipeline_mode<synchronous>, transform_indices = @transform_9, window_bounds = array<i64: 1, 64>}, {pipeline_mode = #tpu.pipeline_mode<synchronous>, transform_indices = @transform_10, window_bounds = array<i64: 1, 64>}, {pipeline_mode = #tpu.pipeline_mode<synchronous>, transform_indices = @transform_11, window_bounds = array<i64: 64, 32>}, {pipeline_mode = #tpu.pipeline_mode<synchronous>, transform_indices = @transform_12, window_bounds = array<i64: 1, 32>}, {pipeline_mode = #tpu.pipeline_mode<synchronous>, transform_indices = @transform_13, window_bounds = array<i64: 1, 32>}, {pipeline_mode = #tpu.pipeline_mode<synchronous>, transform_indices = @transform_14, window_bounds = array<i64: 1, 32>}, {pipeline_mode = #tpu.pipeline_mode<synchronous>, transform_indices = @transform_15, window_bounds = array<i64: 2, 32>}]} {
    %c0_i32 = arith.constant 0 : i32
    %0 = arith.cmpi eq, %arg0, %c0_i32 : i32
    %1 = arith.extui %0 : i1 to i32
    %c0_i32_0 = arith.constant 0 : i32
    %2 = arith.cmpi ne, %1, %c0_i32_0 : i32
    scf.if %2 {
      %cst_10 = arith.constant 0.000000e+00 : f32
      %12 = vector.broadcast %cst_10 : f32 to vector<2x32xf32>
      %c0_11 = arith.constant 0 : index
      %c0_12 = arith.constant 0 : index
      %13 = vector.load %arg17[%c0_11, %c0_12] : memref<2x32xf32, #tpu.memory_space<vmem>>, vector<2x32xf32>
      tpu.vector_store %arg17[%c0_11, %c0_12], %12 {strides = array<i32>} : memref<2x32xf32, #tpu.memory_space<vmem>>, vector<2x32xf32>,
    } else {
    }
    %c0 = arith.constant 0 : index
    %c0_1 = arith.constant 0 : index
    %3 = vector.load %arg17[%c0, %c0_1] : memref<2x32xf32, #tpu.memory_space<vmem>>, vector<2x32xf32>
    %c0_2 = arith.constant 0 : index
    %c0_3 = arith.constant 0 : index
    %4 = vector.load %arg1[%c0_2, %c0_3] : memref<2x128xbf16, #tpu.memory_space<vmem>>, vector<2x128xbf16>
    %c0_4 = arith.constant 0 : index
    %c0_5 = arith.constant 0 : index
    %5 = vector.load %arg2[%c0_4, %c0_5] : memref<128x32xbf16, #tpu.memory_space<vmem>>, vector<128x32xbf16>
    %cst = arith.constant dense<0.000000e+00> : vector<2x32xf32>
    %6 = tpu.matmul %4, %5, %cst {dimension_numbers = #tpu.dot_dimension_numbers<[1], [0], [0], [1], [0, 0, 1, 1], [], []>} : vector<2x128xbf16>, vector<128x32xbf16>, vector<2x32xf32> -> vector<2x32xf32>
    %7 = arith.addf %3, %6 : vector<2x32xf32>
    %c0_6 = arith.constant 0 : index
    %c0_7 = arith.constant 0 : index
    %8 = vector.load %arg17[%c0_6, %c0_7] : memref<2x32xf32, #tpu.memory_space<vmem>>, vector<2x32xf32>
    tpu.vector_store %arg17[%c0_6, %c0_7], %7 {strides = array<i32>} : memref<2x32xf32, #tpu.memory_space<vmem>>, vector<2x32xf32>,
    %c0_i32_8 = arith.constant 0 : i32
    %9 = arith.cmpi eq, %arg0, %c0_i32_8 : i32
    %10 = arith.extui %9 : i1 to i32
    %c0_i32_9 = arith.constant 0 : i32
    %11 = arith.cmpi ne, %10, %c0_i32_9 : i32
    scf.if %11 {
      %c0_10 = arith.constant 0 : index
      %c0_11 = arith.constant 0 : index
      %12 = vector.load %arg17[%c0_10, %c0_11] : memref<2x32xf32, #tpu.memory_space<vmem>>, vector<2x32xf32>
      %c0_12 = arith.constant 0 : index
      %c0_13 = arith.constant 0 : index
      %13 = vector.load %arg3[%c0_12, %c0_13] : memref<1x32xf32, #tpu.memory_space<vmem>>, vector<1x32xf32>
      %14 = vector.broadcast %13 : vector<1x32xf32> to vector<2x32xf32>
      %15 = arith.addf %12, %14 : vector<2x32xf32>
      %c0_14 = arith.constant 0 : index
      %c0_15 = arith.constant 0 : index
      %16 = vector.load %arg4[%c0_14, %c0_15] : memref<32x32xf32, #tpu.memory_space<vmem>>, vector<32x32xf32>
      %cst_16 = arith.constant dense<0.000000e+00> : vector<2x32xf32>
      %17 = tpu.matmul %15, %16, %cst_16 {dimension_numbers = #tpu.dot_dimension_numbers<[1], [0], [0], [1], [0, 0, 1, 1], [], []>} : vector<2x32xf32>, vector<32x32xf32>, vector<2x32xf32> -> vector<2x32xf32>
      %c0_17 = arith.constant 0 : index
      %c0_18 = arith.constant 0 : index
      %18 = vector.load %arg5[%c0_17, %c0_18] : memref<1x32xf32, #tpu.memory_space<vmem>>, vector<1x32xf32>
      %19 = vector.broadcast %18 : vector<1x32xf32> to vector<2x32xf32>
      %20 = arith.addf %17, %19 : vector<2x32xf32>
      %c0_19 = arith.constant 0 : index
      %c0_20 = arith.constant 0 : index
      %21 = vector.load %arg6[%c0_19, %c0_20] : memref<32x32xf32, #tpu.memory_space<vmem>>, vector<32x32xf32>
      %cst_21 = arith.constant dense<0.000000e+00> : vector<2x32xf32>
      %22 = tpu.matmul %20, %21, %cst_21 {dimension_numbers = #tpu.dot_dimension_numbers<[1], [0], [0], [1], [0, 0, 1, 1], [], []>} : vector<2x32xf32>, vector<32x32xf32>, vector<2x32xf32> -> vector<2x32xf32>
      %c0_22 = arith.constant 0 : index
      %c0_23 = arith.constant 0 : index
      %23 = vector.load %arg7[%c0_22, %c0_23] : memref<1x32xf32, #tpu.memory_space<vmem>>, vector<1x32xf32>
      %24 = vector.broadcast %23 : vector<1x32xf32> to vector<2x32xf32>
      %25 = arith.addf %22, %24 : vector<2x32xf32>
      %c0_24 = arith.constant 0 : index
      %c0_25 = arith.constant 0 : index
      %26 = vector.load %arg8[%c0_24, %c0_25] : memref<32x64xf32, #tpu.memory_space<vmem>>, vector<32x64xf32>
      %cst_26 = arith.constant dense<0.000000e+00> : vector<2x64xf32>
      %27 = tpu.matmul %25, %26, %cst_26 {dimension_numbers = #tpu.dot_dimension_numbers<[1], [0], [0], [1], [0, 0, 1, 1], [], []>} : vector<2x32xf32>, vector<32x64xf32>, vector<2x64xf32> -> vector<2x64xf32>
      %c0_27 = arith.constant 0 : index
      %c0_28 = arith.constant 0 : index
      %28 = vector.load %arg9[%c0_27, %c0_28] : memref<1x64xf32, #tpu.memory_space<vmem>>, vector<1x64xf32>
      %29 = vector.broadcast %28 : vector<1x64xf32> to vector<2x64xf32>
      %30 = arith.addf %27, %29 : vector<2x64xf32>
      %c0_29 = arith.constant 0 : index
      %c0_30 = arith.constant 0 : index
      %31 = vector.load %arg10[%c0_29, %c0_30] : memref<1x64xf32, #tpu.memory_space<vmem>>, vector<1x64xf32>
      %c0_31 = arith.constant 0 : index
      %c0_32 = arith.constant 0 : index
      %32 = vector.load %arg11[%c0_31, %c0_32] : memref<1x64xf32, #tpu.memory_space<vmem>>, vector<1x64xf32>
      %cst_33 = arith.constant dense<0.000000e+00> : vector<2xf32>
      %33 = vector.multi_reduction <add>, %30, %cst_33 [1] : vector<2x64xf32> to vector<2xf32>
      %34 = vector.shape_cast %33 : vector<2xf32> to vector<2x1xf32>
      %cst_34 = arith.constant 6.400000e+01 : f32
      %35 = vector.broadcast %cst_34 : f32 to vector<2x1xf32>
      %36 = arith.divf %34, %35 : vector<2x1xf32>
      %37 = vector.broadcast %36 : vector<2x1xf32> to vector<2x64xf32>
      %38 = arith.subf %30, %37 : vector<2x64xf32>
      %39 = arith.mulf %38, %38 : vector<2x64xf32>
      %cst_35 = arith.constant dense<0.000000e+00> : vector<2xf32>
      %40 = vector.multi_reduction <add>, %39, %cst_35 [1] : vector<2x64xf32> to vector<2xf32>
      %41 = vector.shape_cast %40 : vector<2xf32> to vector<2x1xf32>
      %cst_36 = arith.constant 6.400000e+01 : f32
      %42 = vector.broadcast %cst_36 : f32 to vector<2x1xf32>
      %43 = arith.divf %41, %42 : vector<2x1xf32>
      %44 = vector.broadcast %36 : vector<2x1xf32> to vector<2x64xf32>
      %45 = arith.subf %30, %44 : vector<2x64xf32>
      %cst_37 = arith.constant 9.99999974E-6 : f32
      %46 = vector.broadcast %cst_37 : f32 to vector<2x1xf32>
      %47 = arith.addf %43, %46 : vector<2x1xf32>
      %48 = math.rsqrt %47 : vector<2x1xf32>
      %49 = vector.broadcast %48 : vector<2x1xf32> to vector<2x64xf32>
      %50 = arith.mulf %45, %49 : vector<2x64xf32>
      %51 = vector.broadcast %31 : vector<1x64xf32> to vector<2x64xf32>
      %52 = arith.mulf %50, %51 : vector<2x64xf32>
      %53 = vector.broadcast %32 : vector<1x64xf32> to vector<2x64xf32>
      %54 = arith.addf %52, %53 : vector<2x64xf32>
      %cst_38 = arith.constant 5.000000e-01 : f32
      %55 = vector.broadcast %cst_38 : f32 to vector<2x64xf32>
      %56 = arith.mulf %55, %54 : vector<2x64xf32>
      %cst_39 = arith.constant 0.707106769 : f32
      %57 = vector.broadcast %cst_39 : f32 to vector<2x64xf32>
      %58 = arith.mulf %54, %57 : vector<2x64xf32>
      %59 = math.absf %58 : vector<2x64xf32>
      %cst_40 = arith.constant 0.327591091 : f32
      %60 = vector.broadcast %cst_40 : f32 to vector<2x64xf32>
      %61 = arith.mulf %60, %59 : vector<2x64xf32>
      %cst_41 = arith.constant 1.000000e+00 : f32
      %62 = vector.broadcast %cst_41 : f32 to vector<2x64xf32>
      %63 = arith.addf %62, %61 : vector<2x64xf32>
      %cst_42 = arith.constant 1.000000e+00 : f32
      %64 = vector.broadcast %cst_42 : f32 to vector<2x64xf32>
      %65 = arith.divf %64, %63 : vector<2x64xf32>
      %cst_43 = arith.constant 1.06140542 : f32
      %66 = vector.broadcast %cst_43 : f32 to vector<2x64xf32>
      %67 = arith.mulf %66, %65 : vector<2x64xf32>
      %cst_44 = arith.constant -1.45315206 : f32
      %68 = vector.broadcast %cst_44 : f32 to vector<2x64xf32>
      %69 = arith.addf %67, %68 : vector<2x64xf32>
      %70 = arith.mulf %69, %65 : vector<2x64xf32>
      %cst_45 = arith.constant 1.42141378 : f32
      %71 = vector.broadcast %cst_45 : f32 to vector<2x64xf32>
      %72 = arith.addf %70, %71 : vector<2x64xf32>
      %73 = arith.mulf %72, %65 : vector<2x64xf32>
      %cst_46 = arith.constant -0.284496725 : f32
      %74 = vector.broadcast %cst_46 : f32 to vector<2x64xf32>
      %75 = arith.addf %73, %74 : vector<2x64xf32>
      %76 = arith.mulf %75, %65 : vector<2x64xf32>
      %cst_47 = arith.constant 0.254829586 : f32
      %77 = vector.broadcast %cst_47 : f32 to vector<2x64xf32>
      %78 = arith.addf %76, %77 : vector<2x64xf32>
      %79 = arith.mulf %78, %65 : vector<2x64xf32>
      %cst_48 = arith.constant 0.000000e+00 : f32
      %80 = vector.broadcast %cst_48 : f32 to vector<2x64xf32>
      %81 = arith.subf %80, %59 : vector<2x64xf32>
      %82 = arith.mulf %81, %59 : vector<2x64xf32>
      %83 = math.exp %82 : vector<2x64xf32>
      %84 = arith.mulf %79, %83 : vector<2x64xf32>
      %cst_49 = arith.constant 1.000000e+00 : f32
      %85 = vector.broadcast %cst_49 : f32 to vector<2x64xf32>
      %86 = arith.subf %85, %84 : vector<2x64xf32>
      %cst_50 = arith.constant 0.000000e+00 : f32
      %87 = vector.broadcast %cst_50 : f32 to vector<2x64xf32>
      %88 = arith.cmpf oge, %58, %87 : vector<2x64xf32>
      %cst_51 = arith.constant 0.000000e+00 : f32
      %89 = vector.broadcast %cst_51 : f32 to vector<2x64xf32>
      %90 = arith.subf %89, %86 : vector<2x64xf32>
      %91 = arith.select %88, %86, %90 : vector<2x64xi1>, vector<2x64xf32>
      %cst_52 = arith.constant 1.000000e+00 : f32
      %92 = vector.broadcast %cst_52 : f32 to vector<2x64xf32>
      %93 = arith.addf %92, %91 : vector<2x64xf32>
      %94 = arith.mulf %56, %93 : vector<2x64xf32>
      %c0_53 = arith.constant 0 : index
      %c0_54 = arith.constant 0 : index
      %95 = vector.load %arg12[%c0_53, %c0_54] : memref<64x32xf32, #tpu.memory_space<vmem>>, vector<64x32xf32>
      %cst_55 = arith.constant dense<0.000000e+00> : vector<2x32xf32>
      %96 = tpu.matmul %94, %95, %cst_55 {dimension_numbers = #tpu.dot_dimension_numbers<[1], [0], [0], [1], [0, 0, 1, 1], [], []>} : vector<2x64xf32>, vector<64x32xf32>, vector<2x32xf32> -> vector<2x32xf32>
      %c0_56 = arith.constant 0 : index
      %c0_57 = arith.constant 0 : index
      %97 = vector.load %arg13[%c0_56, %c0_57] : memref<1x32xf32, #tpu.memory_space<vmem>>, vector<1x32xf32>
      %98 = vector.broadcast %97 : vector<1x32xf32> to vector<2x32xf32>
      %99 = arith.addf %96, %98 : vector<2x32xf32>
      %c0_58 = arith.constant 0 : index
      %c0_59 = arith.constant 0 : index
      %100 = vector.load %arg14[%c0_58, %c0_59] : memref<1x32xf32, #tpu.memory_space<vmem>>, vector<1x32xf32>
      %c0_60 = arith.constant 0 : index
      %c0_61 = arith.constant 0 : index
      %101 = vector.load %arg15[%c0_60, %c0_61] : memref<1x32xf32, #tpu.memory_space<vmem>>, vector<1x32xf32>
      %cst_62 = arith.constant dense<0.000000e+00> : vector<2xf32>
      %102 = vector.multi_reduction <add>, %99, %cst_62 [1] : vector<2x32xf32> to vector<2xf32>
      %103 = vector.shape_cast %102 : vector<2xf32> to vector<2x1xf32>
      %cst_63 = arith.constant 3.200000e+01 : f32
      %104 = vector.broadcast %cst_63 : f32 to vector<2x1xf32>
      %105 = arith.divf %103, %104 : vector<2x1xf32>
      %106 = vector.broadcast %105 : vector<2x1xf32> to vector<2x32xf32>
      %107 = arith.subf %99, %106 : vector<2x32xf32>
      %108 = arith.mulf %107, %107 : vector<2x32xf32>
      %cst_64 = arith.constant dense<0.000000e+00> : vector<2xf32>
      %109 = vector.multi_reduction <add>, %108, %cst_64 [1] : vector<2x32xf32> to vector<2xf32>
      %110 = vector.shape_cast %109 : vector<2xf32> to vector<2x1xf32>
      %cst_65 = arith.constant 3.200000e+01 : f32
      %111 = vector.broadcast %cst_65 : f32 to vector<2x1xf32>
      %112 = arith.divf %110, %111 : vector<2x1xf32>
      %113 = vector.broadcast %105 : vector<2x1xf32> to vector<2x32xf32>
      %114 = arith.subf %99, %113 : vector<2x32xf32>
      %cst_66 = arith.constant 9.99999974E-6 : f32
      %115 = vector.broadcast %cst_66 : f32 to vector<2x1xf32>
      %116 = arith.addf %112, %115 : vector<2x1xf32>
      %117 = math.rsqrt %116 : vector<2x1xf32>
      %118 = vector.broadcast %117 : vector<2x1xf32> to vector<2x32xf32>
      %119 = arith.mulf %114, %118 : vector<2x32xf32>
      %120 = vector.broadcast %100 : vector<1x32xf32> to vector<2x32xf32>
      %121 = arith.mulf %119, %120 : vector<2x32xf32>
      %122 = vector.broadcast %101 : vector<1x32xf32> to vector<2x32xf32>
      %123 = arith.addf %121, %122 : vector<2x32xf32>
      %c0_67 = arith.constant 0 : index
      %c0_68 = arith.constant 0 : index
      %124 = vector.load %arg16[%c0_67, %c0_68] : memref<2x32xf32, #tpu.memory_space<vmem>>, vector<2x32xf32>
      tpu.vector_store %arg16[%c0_67, %c0_68], %123 {strides = array<i32>} : memref<2x32xf32, #tpu.memory_space<vmem>>, vector<2x32xf32>,
    } else {
    }
    return
  }
  func.func @transform_0(%arg0: i32) -> (i32, i32) {
    %c0_i32 = arith.constant 0 : i32
    %c0_i32_0 = arith.constant 0 : i32
    return %c0_i32, %arg0 : i32, i32
  }
  func.func @transform_1(%arg0: i32) -> (i32, i32) {
    %c0_i32 = arith.constant 0 : i32
    %c0_i32_0 = arith.constant 0 : i32
    return %arg0, %c0_i32 : i32, i32
  }
  func.func @transform_2(%arg0: i32) -> (i32, i32) {
    %c0_i32 = arith.constant 0 : i32
    %c0_i32_0 = arith.constant 0 : i32
    %c0_i32_1 = arith.constant 0 : i32
    return %c0_i32, %c0_i32_0 : i32, i32
  }
  func.func @transform_3(%arg0: i32) -> (i32, i32) {
    %c0_i32 = arith.constant 0 : i32
    %c0_i32_0 = arith.constant 0 : i32
    %c0_i32_1 = arith.constant 0 : i32
    return %c0_i32, %c0_i32_0 : i32, i32
  }
  func.func @transform_4(%arg0: i32) -> (i32, i32) {
    %c0_i32 = arith.constant 0 : i32
    %c0_i32_0 = arith.constant 0 : i32
    %c0_i32_1 = arith.constant 0 : i32
    return %c0_i32, %c0_i32_0 : i32, i32
  }
  func.func @transform_5(%arg0: i32) -> (i32, i32) {
    %c0_i32 = arith.constant 0 : i32
    %c0_i32_0 = arith.constant 0 : i32
    %c0_i32_1 = arith.constant 0 : i32
    return %c0_i32, %c0_i32_0 : i32, i32
  }
  func.func @transform_6(%arg0: i32) -> (i32, i32) {
    %c0_i32 = arith.constant 0 : i32
    %c0_i32_0 = arith.constant 0 : i32
    %c0_i32_1 = arith.constant 0 : i32
    return %c0_i32, %c0_i32_0 : i32, i32
  }
  func.func @transform_7(%arg0: i32) -> (i32, i32) {
    %c0_i32 = arith.constant 0 : i32
    %c0_i32_0 = arith.constant 0 : i32
    %c0_i32_1 = arith.constant 0 : i32
    return %c0_i32, %c0_i32_0 : i32, i32
  }
  func.func @transform_8(%arg0: i32) -> (i32, i32) {
    %c0_i32 = arith.constant 0 : i32
    %c0_i32_0 = arith.constant 0 : i32
    %c0_i32_1 = arith.constant 0 : i32
    return %c0_i32, %c0_i32_0 : i32, i32
  }
  func.func @transform_9(%arg0: i32) -> (i32, i32) {
    %c0_i32 = arith.constant 0 : i32
    %c0_i32_0 = arith.constant 0 : i32
    %c0_i32_1 = arith.constant 0 : i32
    return %c0_i32, %c0_i32_0 : i32, i32
  }
  func.func @transform_10(%arg0: i32) -> (i32, i32) {
    %c0_i32 = arith.constant 0 : i32
    %c0_i32_0 = arith.constant 0 : i32
    %c0_i32_1 = arith.constant 0 : i32
    return %c0_i32, %c0_i32_0 : i32, i32
  }
  func.func @transform_11(%arg0: i32) -> (i32, i32) {
    %c0_i32 = arith.constant 0 : i32
    %c0_i32_0 = arith.constant 0 : i32
    %c0_i32_1 = arith.constant 0 : i32
    return %c0_i32, %c0_i32_0 : i32, i32
  }
  func.func @transform_12(%arg0: i32) -> (i32, i32) {
    %c0_i32 = arith.constant 0 : i32
    %c0_i32_0 = arith.constant 0 : i32
    %c0_i32_1 = arith.constant 0 : i32
    return %c0_i32, %c0_i32_0 : i32, i32
  }
  func.func @transform_13(%arg0: i32) -> (i32, i32) {
    %c0_i32 = arith.constant 0 : i32
    %c0_i32_0 = arith.constant 0 : i32
    %c0_i32_1 = arith.constant 0 : i32
    return %c0_i32, %c0_i32_0 : i32, i32
  }
  func.func @transform_14(%arg0: i32) -> (i32, i32) {
    %c0_i32 = arith.constant 0 : i32
    %c0_i32_0 = arith.constant 0 : i32
    %c0_i32_1 = arith.constant 0 : i32
    return %c0_i32, %c0_i32_0 : i32, i32
  }
  func.func @transform_15(%arg0: i32) -> (i32, i32) {
    %c0_i32 = arith.constant 0 : i32
    %c0_i32_0 = arith.constant 0 : i32
    %c0_i32_1 = arith.constant 0 : i32
    return %c0_i32, %c0_i32_0 : i32, i32
  }
}

</mosaic_0001>

<llo_original>
// kernel: _lambda_.1
$region0: #{_lambda_.1}
  #allocation0 [shape = 'u32[]', space=smem, size = 0x4, offset = 0x4, fixed_abs, tag = 'smem constant byte address 0x4 - core index']
  #allocation1 [shape = 'u32[144,128]{1,0:T(1,128)}', space=vmem, size = 0x12000, scoped, tag = 'internal scratch']
  #allocation2 [shape = 'f32[2,32]{1,0:T(2,128)}', space=vmem, size = 0x400, scoped, tag = 'scratch operand']
  %s0 = inlined_call_operand.vmem [shape: bf16[2,128], index: 0, kind: input, shape index: {}]
  %s1 = inlined_call_operand.hbm [shape: bf16[128,32], index: 1, kind: input, shape index: {}]
  %s2 = inlined_call_operand.vmem [shape: f32[1,32], index: 2, kind: input, shape index: {}]
  %s3 = inlined_call_operand.hbm [shape: f32[32,32], index: 3, kind: input, shape index: {}]
  %s4 = inlined_call_operand.vmem [shape: f32[1,32], index: 4, kind: input, shape index: {}]
  %s5 = inlined_call_operand.hbm [shape: f32[32,32], index: 5, kind: input, shape index: {}]
  %s6 = inlined_call_operand.vmem [shape: f32[1,32], index: 6, kind: input, shape index: {}]
  %s7 = inlined_call_operand.hbm [shape: f32[32,64], index: 7, kind: input, shape index: {}]
  %s8 = inlined_call_operand.vmem [shape: f32[1,64], index: 8, kind: input, shape index: {}]
  %s9 = inlined_call_operand.vmem [shape: f32[1,64], index: 9, kind: input, shape index: {}]
  %s10 = inlined_call_operand.vmem [shape: f32[1,64], index: 10, kind: input, shape index: {}]
  %s11 = inlined_call_operand.hbm [shape: f32[64,32], index: 11, kind: input, shape index: {}]
  %s12 = inlined_call_operand.vmem [shape: f32[1,32], index: 12, kind: input, shape index: {}]
  %s13 = inlined_call_operand.vmem [shape: f32[1,32], index: 13, kind: input, shape index: {}]
  %s14 = inlined_call_operand.vmem [shape: f32[1,32], index: 14, kind: input, shape index: {}]
  %s15 = inlined_call_operand.vmem [shape: f32[2,32], index: 15, kind: output, shape index: {}]
  %s16 = sld [smem:[#allocation0]]
  $region98: #{_lambda_.1} parent=0
    _
  %s18 = ssub.s32 1, %s16
  %s19 = scalar_select 0, %s18, %s16
  $region1: #{_lambda_.1} parent=0
    #allocation3 [shape = 'u8[32768]{0}', space=vmem, size = 0x8000, scoped, tag = 'input window, operand 1, single buffered']
    #allocation4 [shape = 's32[1]{0}', space=sflag, size = 0x4, scoped, tag = 'scoped memory for _lambda_.1']
    #allocation5 [shape = 'u8[16384]{0}', space=vmem, size = 0x4000, scoped, tag = 'input window, operand 3, single buffered']
    #allocation6 [shape = 's32[1]{0}', space=sflag, size = 0x4, scoped, tag = 'scoped memory for _lambda_.1']
    #allocation7 [shape = 'u8[16384]{0}', space=vmem, size = 0x4000, scoped, tag = 'input window, operand 5, single buffered']
    #allocation8 [shape = 'u8[16384]{0}', space=vmem, size = 0x4000, scoped, tag = 'input window, operand 7, single buffered']
    #allocation9 [shape = 's32[1]{0}', space=sflag, size = 0x4, scoped, tag = 'scoped memory for _lambda_.1']
    #allocation10 [shape = 'u8[32768]{0}', space=vmem, size = 0x8000, scoped, tag = 'input window, operand 11, single buffered']
    %20 = vsyncpa [#allocation4], 0
    %21 = vsyncpa [#allocation6], 0
    %22 = vsyncpa [#allocation9], 0
    // Predicated region
    $region2: #{_lambda_.1} parent=1 // pred_check
      _
    $region3: #{_lambda_.1} parent=1 // pred_check_branch
      %24 = sbr.rel (0) target = $region5
    $region4: #{_lambda_.1} parent=1 // pred_region
      _
    $region5: #{_lambda_.1} parent=1 // pred_fallthru
      _
    // Predicated region
    $region6: #{_lambda_.1} parent=1 // pred_check
      _
    $region7: #{_lambda_.1} parent=1 // pred_check_branch
      %26 = sbr.rel (0) target = $region9
    $region8: #{_lambda_.1} parent=1 // pred_region
      %s28 = ssub.s32 1024, 1024
      %29 = vsyncadd [#allocation4], %s28
      %s30 = sshll.u32 [#allocation3], 4
      %s31 = int_to_ptr.vmem [resolvable:$true] %s30
      %36 = dma.hbm_to_vmem [thread:$0]  %s1, 1024, %s31, [#allocation4], 64, 64, 4
    $region9: #{_lambda_.1} parent=1 // pred_fallthru
      _
    // Predicated region
    $region10: #{_lambda_.1} parent=1 // pred_check
      _
    $region11: #{_lambda_.1} parent=1 // pred_check_branch
      %38 = sbr.rel (0) target = $region13
    $region12: #{_lambda_.1} parent=1 // pred_region
      _
    $region13: #{_lambda_.1} parent=1 // pred_fallthru
      _
    // Predicated region
    $region14: #{_lambda_.1} parent=1 // pred_check
      _
    $region15: #{_lambda_.1} parent=1 // pred_check_branch
      %40 = sbr.rel (0) target = $region17
    $region16: #{_lambda_.1} parent=1 // pred_region
      %s42 = ssub.s32 512, 512
      %43 = vsyncadd [#allocation6], %s42
      %s44 = sshll.u32 [#allocation5], 4
      %s45 = int_to_ptr.vmem [resolvable:$true] %s44
      %50 = dma.hbm_to_vmem [thread:$0]  %s3, 512, %s45, [#allocation6], 128, 128, 8
    $region17: #{_lambda_.1} parent=1 // pred_fallthru
      _
    // Predicated region
    $region18: #{_lambda_.1} parent=1 // pred_check
      _
    $region19: #{_lambda_.1} parent=1 // pred_check_branch
      %52 = sbr.rel (0) target = $region21
    $region20: #{_lambda_.1} parent=1 // pred_region
      _
    $region21: #{_lambda_.1} parent=1 // pred_fallthru
      _
    // Predicated region
    $region22: #{_lambda_.1} parent=1 // pred_check
      _
    $region23: #{_lambda_.1} parent=1 // pred_check_branch
      %54 = sbr.rel (0) target = $region25
    $region24: #{_lambda_.1} parent=1 // pred_region
      %s56 = ssub.s32 512, 512
      %57 = vsyncadd [#allocation6], %s56
      %s58 = sshll.u32 [#allocation7], 4
      %s59 = int_to_ptr.vmem [resolvable:$true] %s58
      %64 = dma.hbm_to_vmem [thread:$0]  %s5, 512, %s59, [#allocation6], 128, 128, 8
    $region25: #{_lambda_.1} parent=1 // pred_fallthru
      _
    // Predicated region
    $region26: #{_lambda_.1} parent=1 // pred_check
      _
    $region27: #{_lambda_.1} parent=1 // pred_check_branch
      %66 = sbr.rel (0) target = $region29
    $region28: #{_lambda_.1} parent=1 // pred_region
      _
    $region29: #{_lambda_.1} parent=1 // pred_fallthru
      _
    // Predicated region
    $region30: #{_lambda_.1} parent=1 // pred_check
      _
    $region31: #{_lambda_.1} parent=1 // pred_check_branch
      %68 = sbr.rel (0) target = $region33
    $region32: #{_lambda_.1} parent=1 // pred_region
      %s70 = ssub.s32 512, 512
      %71 = vsyncadd [#allocation9], %s70
      %s72 = sshll.u32 [#allocation8], 4
      %s73 = int_to_ptr.vmem [resolvable:$true] %s72
      %78 = dma.hbm_to_vmem [thread:$0]  %s7, 512, %s73, [#allocation9], 128, 128, 8
    $region33: #{_lambda_.1} parent=1 // pred_fallthru
      _
    // Predicated region
    $region34: #{_lambda_.1} parent=1 // pred_check
      _
    $region35: #{_lambda_.1} parent=1 // pred_check_branch
      %80 = sbr.rel (0) target = $region37
    $region36: #{_lambda_.1} parent=1 // pred_region
      _
    $region37: #{_lambda_.1} parent=1 // pred_fallthru
      _
    // Predicated region
    $region38: #{_lambda_.1} parent=1 // pred_check
      _
    $region39: #{_lambda_.1} parent=1 // pred_check_branch
      %82 = sbr.rel (0) target = $region41
    $region40: #{_lambda_.1} parent=1 // pred_region
      _
    $region41: #{_lambda_.1} parent=1 // pred_fallthru
      _
    // Predicated region
    $region42: #{_lambda_.1} parent=1 // pred_check
      _
    $region43: #{_lambda_.1} parent=1 // pred_check_branch
      %84 = sbr.rel (0) target = $region45
    $region44: #{_lambda_.1} parent=1 // pred_region
      _
    $region45: #{_lambda_.1} parent=1 // pred_fallthru
      _
    // Predicated region
    $region46: #{_lambda_.1} parent=1 // pred_check
      _
    $region47: #{_lambda_.1} parent=1 // pred_check_branch
      %86 = sbr.rel (0) target = $region49
    $region48: #{_lambda_.1} parent=1 // pred_region
      %s88 = ssub.s32 1024, 1024
      %89 = vsyncadd [#allocation9], %s88
      %s90 = sshll.u32 [#allocation10], 4
      %s91 = int_to_ptr.vmem [resolvable:$true] %s90
      %96 = dma.hbm_to_vmem [thread:$0]  %s11, 1024, %s91, [#allocation9], 128, 128, 8
    $region49: #{_lambda_.1} parent=1 // pred_fallthru
      _
    // Predicated region
    $region50: #{_lambda_.1} parent=1 // pred_check
      _
    $region51: #{_lambda_.1} parent=1 // pred_check_branch
      %98 = sbr.rel (0) target = $region53
    $region52: #{_lambda_.1} parent=1 // pred_region
      _
    $region53: #{_lambda_.1} parent=1 // pred_fallthru
      _
    // Predicated region
    $region54: #{_lambda_.1} parent=1 // pred_check
      _
    $region55: #{_lambda_.1} parent=1 // pred_check_branch
      %100 = sbr.rel (0) target = $region57
    $region56: #{_lambda_.1} parent=1 // pred_region
      _
    $region57: #{_lambda_.1} parent=1 // pred_fallthru
      _
    // Predicated region
    $region58: #{_lambda_.1} parent=1 // pred_check
      _
    $region59: #{_lambda_.1} parent=1 // pred_check_branch
      %102 = sbr.rel (0) target = $region61
    $region60: #{_lambda_.1} parent=1 // pred_region
      _
    $region61: #{_lambda_.1} parent=1 // pred_fallthru
      _
    // Predicated region
    $region62: #{_lambda_.1} parent=1 // pred_check
      _
    $region63: #{_lambda_.1} parent=1 // pred_check_branch
      %104 = sbr.rel (0) target = $region65
    $region64: #{_lambda_.1} parent=1 // pred_region
      %105 = dma.done [#allocation4], 1024
    $region65: #{_lambda_.1} parent=1 // pred_fallthru
      _
    // Predicated region
    $region66: #{_lambda_.1} parent=1 // pred_check
      _
    $region67: #{_lambda_.1} parent=1 // pred_check_branch
      %107 = sbr.rel (0) target = $region69
    $region68: #{_lambda_.1} parent=1 // pred_region
      %108 = dma.done [#allocation6], 512
    $region69: #{_lambda_.1} parent=1 // pred_fallthru
      _
    // Predicated region
    $region70: #{_lambda_.1} parent=1 // pred_check
      _
    $region71: #{_lambda_.1} parent=1 // pred_check_branch
      %110 = sbr.rel (0) target = $region73
    $region72: #{_lambda_.1} parent=1 // pred_region
      %111 = dma.done [#allocation6], 512
    $region73: #{_lambda_.1} parent=1 // pred_fallthru
      _
    // Predicated region
    $region74: #{_lambda_.1} parent=1 // pred_check
      _
    $region75: #{_lambda_.1} parent=1 // pred_check_branch
      %113 = sbr.rel (0) target = $region77
    $region76: #{_lambda_.1} parent=1 // pred_region
      %114 = dma.done [#allocation9], 512
    $region77: #{_lambda_.1} parent=1 // pred_fallthru
      _
    // Predicated region
    $region78: #{_lambda_.1} parent=1 // pred_check
      _
    $region79: #{_lambda_.1} parent=1 // pred_check_branch
      %116 = sbr.rel (0) target = $region81
    $region80: #{_lambda_.1} parent=1 // pred_region
      %117 = dma.done [#allocation9], 1024
    $region81: #{_lambda_.1} parent=1 // pred_fallthru
      _
    %p119 = scmp.eq.s32.totalorder 0, 0
    // Predicated region
    $region82: #{_lambda_.1} parent=1 // pred_check
      %p120 = pneg %p119
    $region83: #{_lambda_.1} parent=1 // pred_check_branch
      %122 = sbr.rel (%p120) target = $region85
    $region84: #{_lambda_.1} parent=1 // pred_region
      %vm123 = vcmask 254976
      %124 = vst.msk [vmem:[#allocation2] sm:$0x3] %vm123, 0.0
    $region85: #{_lambda_.1} parent=1 // pred_fallthru
      _
    %v125 = vld [vmem:[#allocation2] sm:$0x3]
    %v126 = vld [vmem:[%s0] sm:$0x1]
    %v127 = vld [vmem:[#allocation3] sm:$0xf]
    %v128 = vld [vmem:[#allocation3 + $0x4] sm:$0xf]
    %v129 = vld [vmem:[#allocation3 + $0x8] sm:$0xf]
    %v130 = vld [vmem:[#allocation3 + $0xc] sm:$0xf]
    %v131 = vld [vmem:[#allocation3 + $0x10] sm:$0xf]
    %v132 = vld [vmem:[#allocation3 + $0x14] sm:$0xf]
    %v133 = vld [vmem:[#allocation3 + $0x18] sm:$0xf]
    %v134 = vld [vmem:[#allocation3 + $0x1c] sm:$0xf]
    %v135 = vld [vmem:[#allocation3 + $0x20] sm:$0xf]
    %v136 = vld [vmem:[#allocation3 + $0x24] sm:$0xf]
    %v137 = vld [vmem:[#allocation3 + $0x28] sm:$0xf]
    %v138 = vld [vmem:[#allocation3 + $0x2c] sm:$0xf]
    %v139 = vld [vmem:[#allocation3 + $0x30] sm:$0xf]
    %v140 = vld [vmem:[#allocation3 + $0x34] sm:$0xf]
    %v141 = vld [vmem:[#allocation3 + $0x38] sm:$0xf]
    %v142 = vld [vmem:[#allocation3 + $0x3c] sm:$0xf]
    %v159 = vunpack.c.l.b16 %v127
    %v160 = vunpack.c.l.b16 %v128
    %v161 = vunpack.c.l.b16 %v129
    %v162 = vunpack.c.l.b16 %v130
    %v163 = vunpack.c.l.b16 %v131
    %v164 = vunpack.c.l.b16 %v132
    %v165 = vunpack.c.l.b16 %v133
    %v166 = vunpack.c.l.b16 %v134
    %v167 = vunpack.c.l.b16 %v135
    %v168 = vunpack.c.l.b16 %v136
    %v169 = vunpack.c.l.b16 %v137
    %v170 = vunpack.c.l.b16 %v138
    %v171 = vunpack.c.l.b16 %v139
    %v172 = vunpack.c.l.b16 %v140
    %v173 = vunpack.c.l.b16 %v141
    %v174 = vunpack.c.l.b16 %v142
    %v175 = vpack.c.b16 %v160, %v159
    %v176 = vpack.c.b16 %v162, %v161
    %v177 = vpack.c.b16 %v164, %v163
    %v178 = vpack.c.b16 %v166, %v165
    %v179 = vpack.c.b16 %v168, %v167
    %v180 = vpack.c.b16 %v170, %v169
    %v181 = vpack.c.b16 %v172, %v171
    %v182 = vpack.c.b16 %v174, %v173
    %191 = vmatprep.subr.bf16.mxu0 0
    %192 = vmatpush1.bf16.msra.mxu0 %v182
    %193 = vmatprep.subr.bf16.mxu0 0
    %194 = vmatpush1.bf16.msra.mxu0 %v181
    %195 = vmatprep.subr.bf16.mxu0 0
    %196 = vmatpush1.bf16.msra.mxu0 %v180
    %197 = vmatprep.subr.bf16.mxu0 0
    %198 = vmatpush1.bf16.msra.mxu0 %v179
    %199 = vmatprep.subr.bf16.mxu0 0
    %200 = vmatpush1.bf16.msra.mxu0 %v178
    %201 = vmatprep.subr.bf16.mxu0 0
    %202 = vmatpush1.bf16.msra.mxu0 %v177
    %203 = vmatprep.subr.bf16.mxu0 0
    %204 = vmatpush1.bf16.msra.mxu0 %v176
    %205 = vmatprep.subr.bf16.mxu0 0
    %206 = vmatpush1.bf16.msra.mxu0 %v175
    %207 = vmatprep.subr.bf16.mxu0 0
    %208 = vmatpush2.bf16.msra.mxu0 0
    %209 = vmatprep.subr.bf16.mxu0 0
    %210 = vmatpush2.bf16.msra.mxu0 0
    %211 = vmatprep.subr.bf16.mxu0 0
    %212 = vmatpush2.bf16.msra.mxu0 0
    %213 = vmatprep.subr.bf16.mxu0 0
    %214 = vmatpush2.bf16.msra.mxu0 0
    %215 = vmatprep.subr.bf16.mxu0 0
    %216 = vmatpush2.bf16.msra.mxu0 0
    %217 = vmatprep.subr.bf16.mxu0 0
    %218 = vmatpush2.bf16.msra.mxu0 0
    %219 = vmatprep.subr.bf16.mxu0 0
    %220 = vmatpush2.bf16.msra.mxu0 0
    %221 = vmatprep.subr.bf16.mxu0 0
    %222 = vmatpush2.bf16.msra.mxu0 0
    %223 = vmatprep.mubr.bf16.mxu0 0
    %224 = vmatmul.mubr.bf16.gmra.mxu0 %v126
    %v225 = vpop.f32.mrf.mxu0
    %v226 = vadd.f32 0.0, %v225
    %v227 = vpop.f32.mrf.mxu0
    %v228 = vpop.f32.mrf.mxu0
    %v229 = vpop.f32.mrf.mxu0
    %230 = vdwg.mxu0
    %v231 = vadd.f32 %v125, %v226
    %vm232 = vcmask 254976
    %233 = vst.msk [vmem:[#allocation2] sm:$0x3] %vm232, %v231
    // Predicated region
    $region86: #{_lambda_.1} parent=1 // pred_check
      %p234 = pneg %p119
    $region87: #{_lambda_.1} parent=1 // pred_check_branch
      %236 = sbr.rel (%p234) target = $region89
    $region88: #{_lambda_.1} parent=1 // pred_region
      %v237 = vld [vmem:[#allocation2] sm:$0x3]
      %v238 = vld [vmem:[%s2] sm:$0x1]
      %v240 = vlaneseq
      %v241 = vshrl.u32 %v240, 7
      %v242 = vsub.s32 0, %v241
      %v243 = vrot.slane %v238, %v242
      %v245 = vadd.f32 %v237, %v243
      %v246 = vld [vmem:[#allocation5] sm:$0xff]
      %v247 = vld [vmem:[#allocation5 + $0x8] sm:$0xff]
      %v248 = vld [vmem:[#allocation5 + $0x10] sm:$0xff]
      %v249 = vld [vmem:[#allocation5 + $0x18] sm:$0xff]
      %v250 = vld [vmem:[%s4] sm:$0x1]
      %v252 = vlaneseq
      %v253 = vshrl.u32 %v252, 7
      %v254 = vsub.s32 0, %v253
      %v255 = vrot.slane %v250, %v254
      %vm257 = vcmask 261120
      %v259 = vsel %vm257, %v245, 0
      %261 = vmatprep.subr.mxu0 0.0
      %262 = vmatpush1.msra.mxu0 0.0
      %263 = vmatprep.subr.mxu0 0.0
      %264 = vmatpush1.msra.mxu0 0.0
      %265 = vmatprep.subr.mxu0 0.0
      %266 = vmatpush1.msra.mxu0 0.0
      %267 = vmatprep.subr.mxu0 0.0
      %268 = vmatpush1.msra.mxu0 0.0
      %269 = vmatprep.subr.mxu0 0.0
      %270 = vmatpush1.msra.mxu0 0.0
      %271 = vmatprep.subr.mxu0 0.0
      %272 = vmatpush1.msra.mxu0 0.0
      %273 = vmatprep.subr.mxu0 0.0
      %274 = vmatpush1.msra.mxu0 0.0
      %275 = vmatprep.subr.mxu0 0.0
      %276 = vmatpush1.msra.mxu0 0.0
      %277 = vmatprep.subr.mxu0 0.0
      %278 = vmatpush1.msra.mxu0 0.0
      %279 = vmatprep.subr.mxu0 0.0
      %280 = vmatpush1.msra.mxu0 0.0
      %281 = vmatprep.subr.mxu0 0.0
      %282 = vmatpush1.msra.mxu0 0.0
      %283 = vmatprep.subr.mxu0 0.0
      %284 = vmatpush1.msra.mxu0 0.0
      %285 = vmatprep.subr.mxu0 0.0
      %286 = vmatpush1.msra.mxu0 %v249
      %287 = vmatprep.subr.mxu0 0.0
      %288 = vmatpush1.msra.mxu0 %v248
      %289 = vmatprep.subr.mxu0 0.0
      %290 = vmatpush1.msra.mxu0 %v247
      %291 = vmatprep.subr.mxu0 0.0
      %292 = vmatpush1.msra.mxu0 %v246
      %293 = vmatprep.subr.mxu0 0.0
      %294 = vmatpush2.msra.mxu0 0.0
      %295 = vmatprep.subr.mxu0 0.0
      %296 = vmatpush2.msra.mxu0 0.0
      %297 = vmatprep.subr.mxu0 0.0
      %298 = vmatpush2.msra.mxu0 0.0
      %299 = vmatprep.subr.mxu0 0.0
      %300 = vmatpush2.msra.mxu0 0.0
      %301 = vmatprep.subr.mxu0 0.0
      %302 = vmatpush2.msra.mxu0 0.0
      %303 = vmatprep.subr.mxu0 0.0
      %304 = vmatpush2.msra.mxu0 0.0
      %305 = vmatprep.subr.mxu0 0.0
      %306 = vmatpush2.msra.mxu0 0.0
      %307 = vmatprep.subr.mxu0 0.0
      %308 = vmatpush2.msra.mxu0 0.0
      %309 = vmatprep.subr.mxu0 0.0
      %310 = vmatpush2.msra.mxu0 0.0
      %311 = vmatprep.subr.mxu0 0.0
      %312 = vmatpush2.msra.mxu0 0.0
      %313 = vmatprep.subr.mxu0 0.0
      %314 = vmatpush2.msra.mxu0 0.0
      %315 = vmatprep.subr.mxu0 0.0
      %316 = vmatpush2.msra.mxu0 0.0
      %317 = vmatprep.subr.mxu0 0.0
      %318 = vmatpush2.msra.mxu0 0.0
      %319 = vmatprep.subr.mxu0 0.0
      %320 = vmatpush2.msra.mxu0 0.0
      %321 = vmatprep.subr.mxu0 0.0
      %322 = vmatpush2.msra.mxu0 0.0
      %323 = vmatprep.subr.mxu0 0.0
      %324 = vmatpush2.msra.mxu0 0.0
      %325 = vmatprep.mubr.f32.mxu0 0.0
      %326 = vmatmul.mubr.f32.gmra.mxu0 %v259
      %v327 = vpop.f32.mrf.mxu0
      %v328 = vadd.f32 %v255, %v327
      %v329 = vpop.f32.mrf.mxu0
      %330 = vdwg.mxu0
      %v331 = vld [vmem:[#allocation7] sm:$0xff]
      %v332 = vld [vmem:[#allocation7 + $0x8] sm:$0xff]
      %v333 = vld [vmem:[#allocation7 + $0x10] sm:$0xff]
      %v334 = vld [vmem:[#allocation7 + $0x18] sm:$0xff]
      %v335 = vld [vmem:[%s6] sm:$0x1]
      %v337 = vlaneseq
      %v338 = vshrl.u32 %v337, 7
      %v339 = vsub.s32 0, %v338
      %v340 = vrot.slane %v335, %v339
      %v343 = vsel %vm257, %v328, 0
      %345 = vmatprep.subr.mxu0 0.0
      %346 = vmatpush1.msra.mxu0 0.0
      %347 = vmatprep.subr.mxu0 0.0
      %348 = vmatpush1.msra.mxu0 0.0
      %349 = vmatprep.subr.mxu0 0.0
      %350 = vmatpush1.msra.mxu0 0.0
      %351 = vmatprep.subr.mxu0 0.0
      %352 = vmatpush1.msra.mxu0 0.0
      %353 = vmatprep.subr.mxu0 0.0
      %354 = vmatpush1.msra.mxu0 0.0
      %355 = vmatprep.subr.mxu0 0.0
      %356 = vmatpush1.msra.mxu0 0.0
      %357 = vmatprep.subr.mxu0 0.0
      %358 = vmatpush1.msra.mxu0 0.0
      %359 = vmatprep.subr.mxu0 0.0
      %360 = vmatpush1.msra.mxu0 0.0
      %361 = vmatprep.subr.mxu0 0.0
      %362 = vmatpush1.msra.mxu0 0.0
      %363 = vmatprep.subr.mxu0 0.0
      %364 = vmatpush1.msra.mxu0 0.0
      %365 = vmatprep.subr.mxu0 0.0
      %366 = vmatpush1.msra.mxu0 0.0
      %367 = vmatprep.subr.mxu0 0.0
      %368 = vmatpush1.msra.mxu0 0.0
      %369 = vmatprep.subr.mxu0 0.0
      %370 = vmatpush1.msra.mxu0 %v334
      %371 = vmatprep.subr.mxu0 0.0
      %372 = vmatpush1.msra.mxu0 %v333
      %373 = vmatprep.subr.mxu0 0.0
      %374 = vmatpush1.msra.mxu0 %v332
      %375 = vmatprep.subr.mxu0 0.0
      %376 = vmatpush1.msra.mxu0 %v331
      %377 = vmatprep.subr.mxu0 0.0
      %378 = vmatpush2.msra.mxu0 0.0
      %379 = vmatprep.subr.mxu0 0.0
      %380 = vmatpush2.msra.mxu0 0.0
      %381 = vmatprep.subr.mxu0 0.0
      %382 = vmatpush2.msra.mxu0 0.0
      %383 = vmatprep.subr.mxu0 0.0
      %384 = vmatpush2.msra.mxu0 0.0
      %385 = vmatprep.subr.mxu0 0.0
      %386 = vmatpush2.msra.mxu0 0.0
      %387 = vmatprep.subr.mxu0 0.0
      %388 = vmatpush2.msra.mxu0 0.0
      %389 = vmatprep.subr.mxu0 0.0
      %390 = vmatpush2.msra.mxu0 0.0
      %391 = vmatprep.subr.mxu0 0.0
      %392 = vmatpush2.msra.mxu0 0.0
      %393 = vmatprep.subr.mxu0 0.0
      %394 = vmatpush2.msra.mxu0 0.0
      %395 = vmatprep.subr.mxu0 0.0
      %396 = vmatpush2.msra.mxu0 0.0
      %397 = vmatprep.subr.mxu0 0.0
      %398 = vmatpush2.msra.mxu0 0.0
      %399 = vmatprep.subr.mxu0 0.0
      %400 = vmatpush2.msra.mxu0 0.0
      %401 = vmatprep.subr.mxu0 0.0
      %402 = vmatpush2.msra.mxu0 0.0
      %403 = vmatprep.subr.mxu0 0.0
      %404 = vmatpush2.msra.mxu0 0.0
      %405 = vmatprep.subr.mxu0 0.0
      %406 = vmatpush2.msra.mxu0 0.0
      %407 = vmatprep.subr.mxu0 0.0
      %408 = vmatpush2.msra.mxu0 0.0
      %409 = vmatprep.mubr.f32.mxu0 0.0
      %410 = vmatmul.mubr.f32.gmra.mxu0 %v343
      %v411 = vpop.f32.mrf.mxu0
      %v412 = vadd.f32 %v340, %v411
      %v413 = vpop.f32.mrf.mxu0
      %414 = vdwg.mxu0
      %v415 = vld [vmem:[#allocation8] sm:$0xff]
      %v416 = vld [vmem:[#allocation8 + $0x8] sm:$0xff]
      %v417 = vld [vmem:[#allocation8 + $0x10] sm:$0xff]
      %v418 = vld [vmem:[#allocation8 + $0x18] sm:$0xff]
      %v419 = vld [vmem:[%s8] sm:$0x1]
      %v421 = vlaneseq
      %v422 = vshrl.u32 %v421, 7
      %v423 = vsub.s32 0, %v422
      %v424 = vrot.slane %v419, %v423
      %v427 = vsel %vm257, %v412, 0
      %429 = vmatprep.subr.mxu0 0.0
      %430 = vmatpush1.msra.mxu0 0.0
      %431 = vmatprep.subr.mxu0 0.0
      %432 = vmatpush1.msra.mxu0 0.0
      %433 = vmatprep.subr.mxu0 0.0
      %434 = vmatpush1.msra.mxu0 0.0
      %435 = vmatprep.subr.mxu0 0.0
      %436 = vmatpush1.msra.mxu0 0.0
      %437 = vmatprep.subr.mxu0 0.0
      %438 = vmatpush1.msra.mxu0 0.0
      %439 = vmatprep.subr.mxu0 0.0
      %440 = vmatpush1.msra.mxu0 0.0
      %441 = vmatprep.subr.mxu0 0.0
      %442 = vmatpush1.msra.mxu0 0.0
      %443 = vmatprep.subr.mxu0 0.0
      %444 = vmatpush1.msra.mxu0 0.0
      %445 = vmatprep.subr.mxu0 0.0
      %446 = vmatpush1.msra.mxu0 0.0
      %447 = vmatprep.subr.mxu0 0.0
      %448 = vmatpush1.msra.mxu0 0.0
      %449 = vmatprep.subr.mxu0 0.0
      %450 = vmatpush1.msra.mxu0 0.0
      %451 = vmatprep.subr.mxu0 0.0
      %452 = vmatpush1.msra.mxu0 0.0
      %453 = vmatprep.subr.mxu0 0.0
      %454 = vmatpush1.msra.mxu0 %v418
      %455 = vmatprep.subr.mxu0 0.0
      %456 = vmatpush1.msra.mxu0 %v417
      %457 = vmatprep.subr.mxu0 0.0
      %458 = vmatpush1.msra.mxu0 %v416
      %459 = vmatprep.subr.mxu0 0.0
      %460 = vmatpush1.msra.mxu0 %v415
      %461 = vmatprep.subr.mxu0 0.0
      %462 = vmatpush2.msra.mxu0 0.0
      %463 = vmatprep.subr.mxu0 0.0
      %464 = vmatpush2.msra.mxu0 0.0
      %465 = vmatprep.subr.mxu0 0.0
      %466 = vmatpush2.msra.mxu0 0.0
      %467 = vmatprep.subr.mxu0 0.0
      %468 = vmatpush2.msra.mxu0 0.0
      %469 = vmatprep.subr.mxu0 0.0
      %470 = vmatpush2.msra.mxu0 0.0
      %471 = vmatprep.subr.mxu0 0.0
      %472 = vmatpush2.msra.mxu0 0.0
      %473 = vmatprep.subr.mxu0 0.0
      %474 = vmatpush2.msra.mxu0 0.0
      %475 = vmatprep.subr.mxu0 0.0
      %476 = vmatpush2.msra.mxu0 0.0
      %477 = vmatprep.subr.mxu0 0.0
      %478 = vmatpush2.msra.mxu0 0.0
      %479 = vmatprep.subr.mxu0 0.0
      %480 = vmatpush2.msra.mxu0 0.0
      %481 = vmatprep.subr.mxu0 0.0
      %482 = vmatpush2.msra.mxu0 0.0
      %483 = vmatprep.subr.mxu0 0.0
      %484 = vmatpush2.msra.mxu0 0.0
      %485 = vmatprep.subr.mxu0 0.0
      %486 = vmatpush2.msra.mxu0 0.0
      %487 = vmatprep.subr.mxu0 0.0
      %488 = vmatpush2.msra.mxu0 0.0
      %489 = vmatprep.subr.mxu0 0.0
      %490 = vmatpush2.msra.mxu0 0.0
      %491 = vmatprep.subr.mxu0 0.0
      %492 = vmatpush2.msra.mxu0 0.0
      %493 = vmatprep.mubr.f32.mxu0 0.0
      %494 = vmatmul.mubr.f32.gmra.mxu0 %v427
      %v495 = vpop.f32.mrf.mxu0
      %v496 = vadd.f32 %v424, %v495
      %v497 = vpop.f32.mrf.mxu0
      %498 = vdwg.mxu0
      %v499 = vld [vmem:[%s9] sm:$0x1]
      %v500 = vld [vmem:[%s10] sm:$0x1]
      %vm501 = vcmask 517120
      %v502 = vsel %vm501, %v496, 0.0
      %503 = vadd.xlane.f32.xlu0 %v502
      %v504 = vpop.xlane.xlu0 %503
      %v505 = vrcp.pop 64.0
      %v506 = vmul.f32 %v504, %v505
      %v507 = vsub.f32 %v496, %v506
      %v508 = vmul.f32 %v507, %v507
      %v509 = vsel %vm501, %v508, 0.0
      %510 = vadd.xlane.f32.xlu0 %v509
      %v511 = vpop.xlane.xlu0 %510
      %v512 = vmul.f32 %v511, %v505
      %v513 = vadd.f32 %v512, 1e-05
      %v514 = vrsqrt.pop %v513
      %v515 = vmul.f32 %v507, %v514
      %v517 = vlaneseq
      %v518 = vshrl.u32 %v517, 7
      %v519 = vsub.s32 0, %v518
      %v520 = vrot.slane %v499, %v519
      %v522 = vmul.f32 %v515, %v520
      %v524 = vlaneseq
      %v525 = vshrl.u32 %v524, 7
      %v526 = vsub.s32 0, %v525
      %v527 = vrot.slane %v500, %v526
      %v529 = vadd.f32 %v522, %v527
      %v530 = vmul.f32 %v529, 0.5
      %v531 = vmul.f32 %v529, 0.70710677
      %v532 = vand.u32 2147483647, %v531
      %v533 = vmul.f32 %v532, 0.3275911
      %v534 = vadd.f32 %v533, 1.0
      %v535 = vrcp.pop %v534
      %v536 = vmul.f32 1.0, %v535
      %v537 = vmul.f32 %v536, 1.0614054
      %v538 = vadd.f32 %v537, -1.4531521
      %v539 = vmul.f32 %v538, %v536
      %v540 = vadd.f32 %v539, 1.4214138
      %v541 = vmul.f32 %v540, %v536
      %v542 = vadd.f32 %v541, -0.28449672
      %v543 = vmul.f32 %v542, %v536
      %v544 = vadd.f32 %v543, 0.2548296
      %v545 = vmul.f32 %v544, %v536
      %v546 = vsub.f32 0.0, %v532
      %v547 = vmul.f32 %v546, %v532
      %v548 = vmul.f32 %v547, 1.442695
      %v549 = vpow.pop %v548
      %v550 = vmul.f32 %v545, %v549
      %v551 = vsub.f32 1.0, %v550
      %vm552 = vcmp.ge.f32.partialorder %v531, 0.0
      %v553 = vsub.f32 0.0, %v551
      %v554 = vsel %vm552, %v551, %v553
      %v555 = vadd.f32 %v554, 1.0
      %v556 = vmul.f32 %v530, %v555
      %v557 = vld [vmem:[#allocation10] sm:$0xff]
      %v558 = vld [vmem:[#allocation10 + $0x8] sm:$0xff]
      %v559 = vld [vmem:[#allocation10 + $0x10] sm:$0xff]
      %v560 = vld [vmem:[#allocation10 + $0x18] sm:$0xff]
      %v561 = vld [vmem:[#allocation10 + $0x20] sm:$0xff]
      %v562 = vld [vmem:[#allocation10 + $0x28] sm:$0xff]
      %v563 = vld [vmem:[#allocation10 + $0x30] sm:$0xff]
      %v564 = vld [vmem:[#allocation10 + $0x38] sm:$0xff]
      %v565 = vld [vmem:[%s12] sm:$0x1]
      %v567 = vlaneseq
      %v568 = vshrl.u32 %v567, 7
      %v569 = vsub.s32 0, %v568
      %v570 = vrot.slane %v565, %v569
      %vm572 = vcmask 523264
      %v574 = vsel %vm572, %v556, 0
      %576 = vmatprep.subr.mxu0 0.0
      %577 = vmatpush1.msra.mxu0 0.0
      %578 = vmatprep.subr.mxu0 0.0
      %579 = vmatpush1.msra.mxu0 0.0
      %580 = vmatprep.subr.mxu0 0.0
      %581 = vmatpush1.msra.mxu0 0.0
      %582 = vmatprep.subr.mxu0 0.0
      %583 = vmatpush1.msra.mxu0 0.0
      %584 = vmatprep.subr.mxu0 0.0
      %585 = vmatpush1.msra.mxu0 0.0
      %586 = vmatprep.subr.mxu0 0.0
      %587 = vmatpush1.msra.mxu0 0.0
      %588 = vmatprep.subr.mxu0 0.0
      %589 = vmatpush1.msra.mxu0 0.0
      %590 = vmatprep.subr.mxu0 0.0
      %591 = vmatpush1.msra.mxu0 0.0
      %592 = vmatprep.subr.mxu0 0.0
      %593 = vmatpush1.msra.mxu0 %v564
      %594 = vmatprep.subr.mxu0 0.0
      %595 = vmatpush1.msra.mxu0 %v563
      %596 = vmatprep.subr.mxu0 0.0
      %597 = vmatpush1.msra.mxu0 %v562
      %598 = vmatprep.subr.mxu0 0.0
      %599 = vmatpush1.msra.mxu0 %v561
      %600 = vmatprep.subr.mxu0 0.0
      %601 = vmatpush1.msra.mxu0 %v560
      %602 = vmatprep.subr.mxu0 0.0
      %603 = vmatpush1.msra.mxu0 %v559
      %604 = vmatprep.subr.mxu0 0.0
      %605 = vmatpush1.msra.mxu0 %v558
      %606 = vmatprep.subr.mxu0 0.0
      %607 = vmatpush1.msra.mxu0 %v557
      %608 = vmatprep.subr.mxu0 0.0
      %609 = vmatpush2.msra.mxu0 0.0
      %610 = vmatprep.subr.mxu0 0.0
      %611 = vmatpush2.msra.mxu0 0.0
      %612 = vmatprep.subr.mxu0 0.0
      %613 = vmatpush2.msra.mxu0 0.0
      %614 = vmatprep.subr.mxu0 0.0
      %615 = vmatpush2.msra.mxu0 0.0
      %616 = vmatprep.subr.mxu0 0.0
      %617 = vmatpush2.msra.mxu0 0.0
      %618 = vmatprep.subr.mxu0 0.0
      %619 = vmatpush2.msra.mxu0 0.0
      %620 = vmatprep.subr.mxu0 0.0
      %621 = vmatpush2.msra.mxu0 0.0
      %622 = vmatprep.subr.mxu0 0.0
      %623 = vmatpush2.msra.mxu0 0.0
      %624 = vmatprep.subr.mxu0 0.0
      %625 = vmatpush2.msra.mxu0 0.0
      %626 = vmatprep.subr.mxu0 0.0
      %627 = vmatpush2.msra.mxu0 0.0
      %628 = vmatprep.subr.mxu0 0.0
      %629 = vmatpush2.msra.mxu0 0.0
      %630 = vmatprep.subr.mxu0 0.0
      %631 = vmatpush2.msra.mxu0 0.0
      %632 = vmatprep.subr.mxu0 0.0
      %633 = vmatpush2.msra.mxu0 0.0
      %634 = vmatprep.subr.mxu0 0.0
      %635 = vmatpush2.msra.mxu0 0.0
      %636 = vmatprep.subr.mxu0 0.0
      %637 = vmatpush2.msra.mxu0 0.0
      %638 = vmatprep.subr.mxu0 0.0
      %639 = vmatpush2.msra.mxu0 0.0
      %640 = vmatprep.mubr.f32.mxu0 0.0
      %641 = vmatmul.mubr.f32.gmra.mxu0 %v574
      %v642 = vpop.f32.mrf.mxu0
      %v643 = vadd.f32 %v570, %v642
      %v644 = vpop.f32.mrf.mxu0
      %645 = vdwg.mxu0
      %v646 = vld [vmem:[%s13] sm:$0x1]
      %v647 = vld [vmem:[%s14] sm:$0x1]
      %v648 = vsel %vm232, %v643, 0.0
      %649 = vadd.xlane.f32.xlu0 %v648
      %v650 = vpop.xlane.xlu0 %649
      %v651 = vrcp.pop 32.0
      %v652 = vmul.f32 %v650, %v651
      %v653 = vsub.f32 %v643, %v652
      %v654 = vmul.f32 %v653, %v653
      %v655 = vsel %vm232, %v654, 0.0
      %656 = vadd.xlane.f32.xlu0 %v655
      %v657 = vpop.xlane.xlu0 %656
      %v658 = vmul.f32 %v657, %v651
      %v659 = vadd.f32 %v658, 1e-05
      %v660 = vrsqrt.pop %v659
      %v661 = vmul.f32 %v653, %v660
      %v663 = vlaneseq
      %v664 = vshrl.u32 %v663, 7
      %v665 = vsub.s32 0, %v664
      %v666 = vrot.slane %v646, %v665
      %v668 = vmul.f32 %v661, %v666
      %v670 = vlaneseq
      %v671 = vshrl.u32 %v670, 7
      %v672 = vsub.s32 0, %v671
      %v673 = vrot.slane %v647, %v672
      %v675 = vadd.f32 %v668, %v673
      %676 = vst.msk [vmem:[%s15] sm:$0x3] %vm232, %v675
    $region89: #{_lambda_.1} parent=1 // pred_fallthru
      _
    // Predicated region
    $region90: #{_lambda_.1} parent=1 // pred_check
      _
    $region91: #{_lambda_.1} parent=1 // pred_check_branch
      %678 = sbr.rel (0) target = $region93
    $region92: #{_lambda_.1} parent=1 // pred_region
      _
    $region93: #{_lambda_.1} parent=1 // pred_fallthru
      _
    // Predicated region
    $region94: #{_lambda_.1} parent=1 // pred_check
      _
    $region95: #{_lambda_.1} parent=1 // pred_check_branch
      %680 = sbr.rel (0) target = $region97
    $region96: #{_lambda_.1} parent=1 // pred_region
      _
    $region97: #{_lambda_.1} parent=1 // pred_fallthru
      _
    %681 = vsyncpa [#allocation4], 1
    %682 = vsyncpa [#allocation6], 1
    %683 = vsyncpa [#allocation9], 1

</llo_original>
